<compile_context>
chip_gen: v7x
topology: tpu7x:2x2x1
jax: 0.10.0
libtpu: 0.0.40
codegen_flags: <defaults>
</compile_context>

<pallas_src>
import functools

import jax
import jax.numpy as jnp
from jax.experimental import pallas as pl
from jax.experimental.pallas import tpu as pltpu


def _convt_matmul_kernel(x_ref, w_ref, b_ref, o_ref, *, matmul_dtype):
    # x_ref: (Cin, TM)   w_ref: (4*Cout, Cin)   b_ref: (4*Cout, 1)
    # o_ref: (4*Cout, TM)   -- spatial pixels live on the lane axis.
    x = x_ref[...]
    w = w_ref[...]
    if matmul_dtype is not None:
        x = x.astype(matmul_dtype)
        w = w.astype(matmul_dtype)
    acc = jnp.dot(w, x, preferred_element_type=jnp.float32)
    o_ref[...] = (acc + b_ref[...].astype(jnp.float32)).astype(o_ref.dtype)


def _pick_spatial_tile(hw, target):
    """Largest lane tile <= target that is a multiple of 128 and divides H*W
    (so no padded copy of the activation is ever materialized); fall back to
    the full spatial extent, which is always a legal lane block."""
    if hw <= target:
        return hw
    t = (target // 128) * 128
    while t >= 128:
        if hw % t == 0:
            return t
        t -= 128
    return hw


def conv_transpose_2x2_s2(x_nchw, weight, bias, *, tm_target=512,
                          matmul_dtype=jnp.bfloat16):
    """ConvTranspose2d(in_ch, out_ch, kernel_size=2, stride=2) in NCHW.

    weight: (in_ch, out_ch, 2, 2)   (PyTorch ConvTranspose2d layout)
    bias:   (out_ch,)
    """
    N, Cin, H, W = x_nchw.shape
    assert weight.shape[0] == Cin and weight.shape[2:] == (2, 2)
    Cout = weight.shape[1]
    C4 = 4 * Cout
    HW = H * W

    # (N, Cin, H, W) -> (N, Cin, H*W): pure reshape, no data movement.
    x = x_nchw.reshape(N, Cin, HW)
    # (Cin, Cout, 2, 2) -> (Cout, 2, 2, Cin) -> (4*Cout, Cin).
    # Row ordering is (cout, di, dj); tiny tensor, negligible cost.
    wmat = jnp.transpose(weight, (1, 2, 3, 0)).reshape(C4, Cin)
    bmat = jnp.repeat(bias, 4).reshape(C4, 1)

    tm = _pick_spatial_tile(HW, tm_target)
    grid = (N, HW // tm)

    # Budget scoped VMEM for the bigger tiles (v5e default is only 16 MiB);
    # clamp to 64 MiB so the request is valid on v7x as well.
    itemsize = jnp.dtype(x_nchw.dtype).itemsize
    need = (2 * (Cin + C4) * tm * itemsize        # double-buffered x / out tiles
            + C4 * Cin * itemsize + C4 * 4)       # resident weights + bias
    vmem_limit = int(min(max(4 * need, 32 * 1024 * 1024), 64 * 1024 * 1024))

    kernel = functools.partial(_convt_matmul_kernel, matmul_dtype=matmul_dtype)
    out = pl.pallas_call(
        kernel,
        grid=grid,
        in_specs=[
            pl.BlockSpec((None, Cin, tm), lambda n, m: (n, 0, m)),
            pl.BlockSpec((C4, Cin), lambda n, m: (0, 0)),
            pl.BlockSpec((C4, 1), lambda n, m: (0, 0)),
        ],
        out_specs=pl.BlockSpec((None, C4, tm), lambda n, m: (n, 0, m)),
        out_shape=jax.ShapeDtypeStruct((N, C4, HW), x_nchw.dtype),
        compiler_params=pltpu.CompilerParams(
            dimension_semantics=("parallel", "parallel"),
            vmem_limit_bytes=vmem_limit),
    )(x, wmat, bmat)

    # (N, 4*Cout, H*W) -> (N, Cout, 2, 2, H, W) -> (N, Cout, H, 2, W, 2)
    # -> (N, Cout, 2H, 2W): the 2x2 interleave as a single fused XLA transpose.
    # TODO(synk): fuse this interleave + pad + concat into the kernel's output
    # BlockSpec (write into the final (N, Cout+C1, H1, W1) slab via
    # input_output_aliases) to kill the remaining HBM round-trip.
    out = out.reshape(N, Cout, 2, 2, H, W)
    out = jnp.transpose(out, (0, 1, 4, 2, 5, 3)).reshape(N, Cout, 2 * H, 2 * W)
    return out


@jax.jit
def up_forward(x1, x2, weight, bias):
    """Pallas implementation of up.forward(x1, x2)."""
    x2u = conv_transpose_2x2_s2(x2, weight, bias)
    diffY = x1.shape[2] - x2u.shape[2]
    diffX = x1.shape[3] - x2u.shape[3]
    x2p = jnp.pad(
        x2u,
        ((0, 0), (0, 0),
         (diffY // 2, diffY - diffY // 2),
         (diffX // 2, diffX - diffX // 2)),
    )
    return jnp.concatenate([x2p, x1], axis=1)


def _reference_up(x1, x2, weight, bias, matmul_dtype=jnp.bfloat16):
    """Pure-JAX reference (no Pallas).  Mirrors the kernel's bf16 matmul
    operands with f32 accumulation so the comparison is tight."""
    N, Cin, H, W = x2.shape
    Cout = weight.shape[1]
    x2c = x2.astype(matmul_dtype).astype(jnp.float32)
    wc = weight.astype(matmul_dtype).astype(jnp.float32)
    out = jnp.zeros((N, Cout, 2 * H, 2 * W), jnp.float32)
    for di in range(2):
        for dj in range(2):
            v = jnp.einsum('nchw,co->nohw', x2c, wc[:, :, di, dj])
            v = v + bias[None, :, None, None]
            out = out.at[:, :, di::2, dj::2].set(v)
    out = out.astype(x2.dtype)
    diffY = x1.shape[2] - out.shape[2]
    diffX = x1.shape[3] - out.shape[3]
    out = jnp.pad(out, ((0, 0), (0, 0),
                        (diffY // 2, diffY - diffY // 2),
                        (diffX // 2, diffX - diffX // 2)))
    return jnp.concatenate([out, x1], axis=1)


if __name__ == "__main__":
    in_ch, out_ch = 8, 4
    N, H2, W2 = 2, 16, 16                 # x2 spatial -> H*W = 256 (lane-dense)
    H1, W1 = 2 * H2 + 1, 2 * W2 + 2       # exercise the F.pad path (diffY=1, diffX=2)

    key = jax.random.PRNGKey(0)
    kx1, kx2, kw, kb = jax.random.split(key, 4)

    x1 = jax.random.normal(kx1, (N, out_ch, H1, W1), dtype=jnp.float32)
    x2 = jax.random.normal(kx2, (N, in_ch, H2, W2), dtype=jnp.float32)

    # Deterministic ConvTranspose2d params, PyTorch-like uniform init.
    fan = in_ch * 2 * 2
    bound = 1.0 / (fan ** 0.5)
    weight = jax.random.uniform(kw, (in_ch, out_ch, 2, 2),
                                minval=-bound, maxval=bound, dtype=jnp.float32)
    bias = jax.random.uniform(kb, (out_ch,),
                              minval=-bound, maxval=bound, dtype=jnp.float32)

    out = jax.block_until_ready(up_forward(x1, x2, weight, bias))
    ref = jax.block_until_ready(_reference_up(x1, x2, weight, bias))

    assert out.shape == (N, 2 * out_ch, H1, W1), out.shape
    assert jnp.allclose(out, ref, atol=1e-3, rtol=1e-3), \
        float(jnp.max(jnp.abs(out - ref)))
    print("KERNEL_OK")
</pallas_src>

<mosaic_0001>
module attributes {stable_mosaic.version = 11 : i64} {
  func.func @_convt_matmul_kernel(%arg0: i32, %arg1: i32, %arg2: memref<1x8x256xf32, #tpu.memory_space<vmem>>, %arg3: memref<16x8xf32, #tpu.memory_space<vmem>>, %arg4: memref<16x1xf32, #tpu.memory_space<vmem>>, %arg5: memref<1x16x256xf32, #tpu.memory_space<vmem>>) attributes {dimension_semantics = [#tpu.dimension_semantics<parallel>, #tpu.dimension_semantics<parallel>], iteration_bounds = array<i64: 2, 1>, scalar_prefetch = 0 : i64, scratch_operands = 0 : i64, tpu.core_type = #tpu.core_type<tc>, window_params = [{transform_indices = @transform_0, window_bounds = array<i64: 1, 8, 256>}, {pipeline_mode = #tpu.pipeline_mode<synchronous>, transform_indices = @transform_1, window_bounds = array<i64: 16, 8>}, {pipeline_mode = #tpu.pipeline_mode<synchronous>, transform_indices = @transform_2, window_bounds = array<i64: 16, 1>}, {transform_indices = @transform_3, window_bounds = array<i64: 1, 16, 256>}]} {
    %c0 = arith.constant 0 : index
    %c0_0 = arith.constant 0 : index
    %c0_1 = arith.constant 0 : index
    %0 = vector.load %arg2[%c0, %c0_0, %c0_1] : memref<1x8x256xf32, #tpu.memory_space<vmem>>, vector<1x8x256xf32>
    %1 = vector.shape_cast %0 : vector<1x8x256xf32> to vector<8x256xf32>
    %c0_2 = arith.constant 0 : index
    %c0_3 = arith.constant 0 : index
    %2 = vector.load %arg3[%c0_2, %c0_3] : memref<16x8xf32, #tpu.memory_space<vmem>>, vector<16x8xf32>
    %3 = arith.truncf %1 : vector<8x256xf32> to vector<8x256xbf16>
    %4 = arith.truncf %2 : vector<16x8xf32> to vector<16x8xbf16>
    %cst = arith.constant dense<0.000000e+00> : vector<16x256xf32>
    %5 = tpu.matmul %4, %3, %cst {dimension_numbers = #tpu.dot_dimension_numbers<[1], [0], [0], [1], [0, 0, 1, 1], [], []>} : vector<16x8xbf16>, vector<8x256xbf16>, vector<16x256xf32> -> vector<16x256xf32>
    %c0_4 = arith.constant 0 : index
    %c0_5 = arith.constant 0 : index
    %6 = vector.load %arg4[%c0_4, %c0_5] : memref<16x1xf32, #tpu.memory_space<vmem>>, vector<16x1xf32>
    %7 = vector.broadcast %6 : vector<16x1xf32> to vector<16x256xf32>
    %8 = arith.addf %5, %7 : vector<16x256xf32>
    %c0_6 = arith.constant 0 : index
    %c0_7 = arith.constant 0 : index
    %c0_8 = arith.constant 0 : index
    %9 = vector.load %arg5[%c0_6, %c0_7, %c0_8] : memref<1x16x256xf32, #tpu.memory_space<vmem>>, vector<1x16x256xf32>
    %10 = vector.shape_cast %9 : vector<1x16x256xf32> to vector<16x256xf32>
    %11 = vector.shape_cast %8 : vector<16x256xf32> to vector<1x16x256xf32>
    tpu.vector_store %arg5[%c0_6, %c0_7, %c0_8], %11 {strides = array<i32>} : memref<1x16x256xf32, #tpu.memory_space<vmem>>, vector<1x16x256xf32>,
    return
  }
  func.func @transform_0(%arg0: i32, %arg1: i32) -> (i32, i32, i32) {
    %c0_i32 = arith.constant 0 : i32
    %c0_i32_0 = arith.constant 0 : i32
    return %arg0, %c0_i32, %arg1 : i32, i32, i32
  }
  func.func @transform_1(%arg0: i32, %arg1: i32) -> (i32, i32) {
    %c0_i32 = arith.constant 0 : i32
    %c0_i32_0 = arith.constant 0 : i32
    %c0_i32_1 = arith.constant 0 : i32
    return %c0_i32, %c0_i32_0 : i32, i32
  }
  func.func @transform_2(%arg0: i32, %arg1: i32) -> (i32, i32) {
    %c0_i32 = arith.constant 0 : i32
    %c0_i32_0 = arith.constant 0 : i32
    %c0_i32_1 = arith.constant 0 : i32
    return %c0_i32, %c0_i32_0 : i32, i32
  }
  func.func @transform_3(%arg0: i32, %arg1: i32) -> (i32, i32, i32) {
    %c0_i32 = arith.constant 0 : i32
    %c0_i32_0 = arith.constant 0 : i32
    return %arg0, %c0_i32, %arg1 : i32, i32, i32
  }
}

</mosaic_0001>

<llo_original>
// kernel: up_forward.1
$region0: #{up_forward.1}
  #allocation0 [shape = 'u32[]', space=smem, size = 0x4, offset = 0x4, fixed_abs, tag = 'smem constant byte address 0x4 - core index']
  #allocation1 [shape = 'u32[144,128]{1,0:T(1,128)}', space=vmem, size = 0x12000, scoped, tag = 'internal scratch']
  %s0 = inlined_call_operand.vmem [shape: f32[2,8,256], index: 0, kind: input, shape index: {}]
  %s1 = inlined_call_operand.vmem [shape: f32[16,8], index: 1, kind: input, shape index: {}]
  %s2 = inlined_call_operand.vmem [shape: f32[16,1], index: 2, kind: input, shape index: {}]
  %s3 = inlined_call_operand.vmem [shape: f32[2,16,256], index: 3, kind: output, shape index: {}]
  %s4 = sld [smem:[#allocation0]]
  $region45: #{up_forward.1} parent=0
    _
  %s6 = ssub.s32 1, %s4
  %s7 = scalar_select 0, %s6, %s4
  loop: start=0, step=1, limit=4
  $region2: #{up_forward.1} parent=0 // loop_pre_header
    _
  $region3: #{up_forward.1} parent=0 // loop_header
    %s9 = sphi 0, %s13
    %p10 = scmp.ge.s32.totalorder %s9, 4
    %s16 = sphi 0, %s28
    %s17 = sphi 0, %s24
    %s18 = sphi 0, %s16
    %s19 = sphi 0, %s17
    %s20 = sphi 0, %s18
    %s21 = sphi 0, %s19
    %s33 = sphi 0, %s35
    %s36 = sphi 0, %s33
    %s37 = sphi 0, %s36
    %s53 = sphi 0, %s37
    %s57 = sphi 0, %s57
    %s59 = sphi 0, %s57
    %s60 = sphi 0, %s59
    %s74 = sphi 0, %s60
    %s78 = sphi 0, %s78
    %s80 = sphi 0, %s78
    %s81 = sphi 0, %s80
    %s95 = sphi 0, %s81
    %s103 = sphi 0, %s105
    %s106 = sphi 0, %s103
    %s107 = sphi 0, %s106
    %s123 = sphi 0, %s107
  $region4: #{up_forward.1} parent=0 // loop_header_branch
    %12 = sbr.rel (%p10) target = $region8
  $region5: #{up_forward.1} parent=0 // loop_body
    %s14 = ssub.s32 %s9, 1
    %s15 = ssub.s32 %s9, 2
    %s22 = sadd.s32 1, %s17
    %p23 = scmp.ge.s32.totalorder %s22, 1
    %s24 = scalar_select %p23, 0, %s22
    %s25 = sadd.s32 1, %s16
    %s26 = scalar_select %p23, %s25, %s16
    %p27 = scmp.ge.s32.totalorder %s26, 2
    %s28 = scalar_select %p27, 0, %s26
    %s29 = ssub.s32 %s16, %s28
    %s30 = ssub.s32 %s17, %s24
    %s31 = sor.u32 %s29, %s30
    %p32 = scmp.eq.s32.totalorder %s31, 0
    %s34 = sadd.s32 %s33, 1
    %s35 = scalar_select %p32, %s33, %s34
    %p38 = pneg %p32
    %p39 = scmp.eq.s32.totalorder %s9, 1
    %p40 = por %p38, %p39
    %p41 = scmp.ne.s32.totalorder %s33, %s36
    %p42 = scmp.eq.s32.totalorder %s9, 0
    %p43 = por %p41, %p42
    %p44 = scmp.ne.s32.totalorder %s33, %s36
    %p45 = scmp.eq.s32.totalorder %s14, 1
    %p46 = por %p44, %p45
    %p47 = scmp.ne.s32.totalorder %s36, %s37
    %p48 = scmp.eq.s32.totalorder %s14, 0
    %p49 = por %p47, %p48
    %p50 = scmp.ne.s32.totalorder %s36, %s37
    %p51 = scmp.eq.s32.totalorder %s15, 1
    %p52 = por %p50, %p51
    %p54 = scmp.ne.s32.totalorder %s37, %s53
    %p55 = scmp.eq.s32.totalorder %s15, 0
    %p56 = por %p54, %p55
    %s58 = sadd.s32 %s57, 1
    %p61 = scmp.eq.s32.totalorder %s9, 1
    %p62 = scmp.ne.s32.totalorder %s57, %s59
    %p63 = scmp.eq.s32.totalorder %s9, 0
    %p64 = por %p62, %p63
    %p65 = scmp.ne.s32.totalorder %s57, %s59
    %p66 = scmp.eq.s32.totalorder %s14, 1
    %p67 = por %p65, %p66
    %p68 = scmp.ne.s32.totalorder %s59, %s60
    %p69 = scmp.eq.s32.totalorder %s14, 0
    %p70 = por %p68, %p69
    %p71 = scmp.ne.s32.totalorder %s59, %s60
    %p72 = scmp.eq.s32.totalorder %s15, 1
    %p73 = por %p71, %p72
    %p75 = scmp.ne.s32.totalorder %s60, %s74
    %p76 = scmp.eq.s32.totalorder %s15, 0
    %p77 = por %p75, %p76
    %s79 = sadd.s32 %s78, 1
    %p82 = scmp.eq.s32.totalorder %s9, 1
    %p83 = scmp.ne.s32.totalorder %s78, %s80
    %p84 = scmp.eq.s32.totalorder %s9, 0
    %p85 = por %p83, %p84
    %p86 = scmp.ne.s32.totalorder %s78, %s80
    %p87 = scmp.eq.s32.totalorder %s14, 1
    %p88 = por %p86, %p87
    %p89 = scmp.ne.s32.totalorder %s80, %s81
    %p90 = scmp.eq.s32.totalorder %s14, 0
    %p91 = por %p89, %p90
    %p92 = scmp.ne.s32.totalorder %s80, %s81
    %p93 = scmp.eq.s32.totalorder %s15, 1
    %p94 = por %p92, %p93
    %p96 = scmp.ne.s32.totalorder %s81, %s95
    %p97 = scmp.eq.s32.totalorder %s15, 0
    %p98 = por %p96, %p97
    %s99 = ssub.s32 %s16, %s28
    %s100 = ssub.s32 %s17, %s24
    %s101 = sor.u32 %s99, %s100
    %p102 = scmp.eq.s32.totalorder %s101, 0
    %s104 = sadd.s32 %s103, 1
    %s105 = scalar_select %p102, %s103, %s104
    %p108 = pneg %p102
    %p109 = scmp.eq.s32.totalorder %s9, 1
    %p110 = por %p108, %p109
    %p111 = scmp.ne.s32.totalorder %s103, %s106
    %p112 = scmp.eq.s32.totalorder %s9, 0
    %p113 = por %p111, %p112
    %p114 = scmp.ne.s32.totalorder %s103, %s106
    %p115 = scmp.eq.s32.totalorder %s14, 1
    %p116 = por %p114, %p115
    %p117 = scmp.ne.s32.totalorder %s106, %s107
    %p118 = scmp.eq.s32.totalorder %s14, 0
    %p119 = por %p117, %p118
    %p120 = scmp.ne.s32.totalorder %s106, %s107
    %p121 = scmp.eq.s32.totalorder %s15, 1
    %p122 = por %p120, %p121
    %p124 = scmp.ne.s32.totalorder %s107, %s123
    %p125 = scmp.eq.s32.totalorder %s15, 0
    %p126 = por %p124, %p125
    %p127 = scmp.le.s32.totalorder 1, %s9
    %p128 = scmp.lt.s32.totalorder %s9, 3
    %p129 = pnand %p127, %p128
    %p130 = pneg %p129
    // Predicated region
    $region9: #{up_forward.1} parent=5 // pred_check
      _
    $region10: #{up_forward.1} parent=5 // pred_check_branch
      %132 = sbr.rel (%p129) target = $region12
    $region11: #{up_forward.1} parent=5 // pred_region
      %s133 = ssub.s32 %s9, 1
      // Predicated region
      $region13: #{up_forward.1} parent=11 // pred_check
        %p134 = pneg %p70
      $region14: #{up_forward.1} parent=11 // pred_check_branch
        %136 = sbr.rel (%p134) target = $region16
      $region15: #{up_forward.1} parent=11 // pred_region
        _
      $region16: #{up_forward.1} parent=11 // pred_fallthru
        _
      // Predicated region
      $region17: #{up_forward.1} parent=11 // pred_check
        %p137 = pneg %p91
      $region18: #{up_forward.1} parent=11 // pred_check_branch
        %139 = sbr.rel (%p137) target = $region20
      $region19: #{up_forward.1} parent=11 // pred_region
        _
      $region20: #{up_forward.1} parent=11 // pred_fallthru
        _
    $region12: #{up_forward.1} parent=5 // pred_fallthru
      _
    %p140 = scmp.lt.s32.totalorder %s9, 2
    // Predicated region
    $region21: #{up_forward.1} parent=5 // pred_check
      %p141 = pneg %p140
    $region22: #{up_forward.1} parent=5 // pred_check_branch
      %143 = sbr.rel (%p141) target = $region24
    $region23: #{up_forward.1} parent=5 // pred_region
      // Predicated region
      $region25: #{up_forward.1} parent=23 // pred_check
        %p144 = pneg %p43
      $region26: #{up_forward.1} parent=23 // pred_check_branch
        %146 = sbr.rel (%p144) target = $region28
      $region27: #{up_forward.1} parent=23 // pred_region
        %s147 = smul.u32 2, %s17
        %p148 = scmp.lt.s32.totalorder %s16, 1
        %s149 = scalar_select %p148, %s16, 1
        %p150 = scmp.lt.s32.totalorder %s147, 1
        %s151 = scalar_select %p150, %s147, 1
        %s152 = smul.addr %s149, 2
        %s153 = sadd.s32 %s151, %s152
        %s154 = smul.addr %s153, 8
        %s155 = scalar_lea.vmem %s0, %s154
        %s156 = smul.u32 2, %s17
      $region28: #{up_forward.1} parent=23 // pred_fallthru
        _
    $region24: #{up_forward.1} parent=5 // pred_fallthru
      _
    %p157 = scmp.le.s32.totalorder 1, %s9
    %p158 = scmp.lt.s32.totalorder %s9, 3
    %p159 = pnand %p157, %p158
    %p160 = pneg %p159
    // Predicated region
    $region29: #{up_forward.1} parent=5 // pred_check
      _
    $region30: #{up_forward.1} parent=5 // pred_check_branch
      %162 = sbr.rel (%p159) target = $region32
    $region31: #{up_forward.1} parent=5 // pred_region
      %s163 = ssub.s32 %s9, 1
      %s164 = smul.u32 2, %s19
      %p165 = scmp.lt.s32.totalorder %s18, 1
      %s166 = scalar_select %p165, %s18, 1
      %p167 = scmp.lt.s32.totalorder %s164, 1
      %s168 = scalar_select %p167, %s164, 1
      %s169 = smul.addr %s166, 2
      %s170 = sadd.s32 %s168, %s169
      %s171 = smul.addr %s170, 8
      %s172 = scalar_lea.vmem %s0, %s171
      %p173 = pneg %p49
      %p174 = pneg %p46
      %p175 = pneg %p70
      %p176 = pneg %p67
      %p177 = pneg %p91
      %p178 = pneg %p88
      %p179 = pneg %p119
      %p180 = pneg %p116
      %s181 = smul.u32 2, %s19
      %p182 = scmp.lt.s32.totalorder %s18, 1
      %s183 = scalar_select %p182, %s18, 1
      %p184 = scmp.lt.s32.totalorder %s181, 1
      %s185 = scalar_select %p184, %s181, 1
      %s186 = smul.addr %s183, 4
      %s187 = sadd.s32 %s185, %s186
      %s188 = smul.addr %s187, 8
      %s189 = scalar_lea.vmem %s3, %s188
      %s190 = smul.u32 2, %s19
      %p191 = scmp.lt.s32.totalorder %s18, 1
      %s192 = scalar_select %p191, %s18, 1
      %p193 = scmp.lt.s32.totalorder %s190, 1
      %s194 = scalar_select %p193, %s190, 1
      %s195 = smul.addr %s192, 2
      %s196 = sadd.s32 %s194, %s195
      %s197 = smul.addr %s196, 8
      %s198 = scalar_lea.vmem %s0, %s197
      %s199 = smul.u32 2, %s19
      %s200 = smul.u32 2, %s19
      %p201 = scmp.lt.s32.totalorder %s18, 1
      %s202 = scalar_select %p201, %s18, 1
      %p203 = scmp.lt.s32.totalorder %s200, 1
      %s204 = scalar_select %p203, %s200, 1
      %s205 = smul.addr %s202, 4
      %s206 = sadd.s32 %s204, %s205
      %s207 = smul.addr %s206, 8
      %s208 = scalar_lea.vmem %s3, %s207
      %s209 = smul.u32 2, %s19
      %v211 = vld [vmem:[%s198] sm:$0xff]
      %v212 = vld [vmem:[%s198 + $0x8] sm:$0xff]
      %v213 = vld [vmem:[%s1] sm:$0xff]
      %v214 = vld [vmem:[%s1 + $0x8] sm:$0xff]
      %v215 = vpack.c.bf16 %v211, %v211
      %v216 = vpack.c.bf16 %v212, %v212
      %v217 = vpack.c.bf16 %v214, %v213
      %v218 = vld [vmem:[%s2] sm:$0xff]
      %v219 = vld [vmem:[%s2 + $0x8] sm:$0xff]
      %221 = vset.pattern.permute.xlu0 0
      %222 = vperm.xlu0 %221, %v218
      %v223 = vpop.permute.xlu0 %222
      %226 = vset.pattern.permute.xlu0 0
      %227 = vperm.xlu0 %226, %v219
      %v228 = vpop.permute.xlu0 %227
      %vm230 = vcmask 64512
      %v232 = vsel %vm230, %v217, 0
      %vm234 = vcmask 1043456
      %v236 = vsel %vm234, %v215, 0
      %v239 = vsel %vm234, %v216, 0
      %241 = vmatprep.subr.bf16.mxu0 %v239
      %242 = vmatpush1.bf16.msra.mxu0 %v236
      %243 = vmatprep.subr.bf16.mxu0 0
      %244 = vmatpush1.bf16.msra.mxu0 0
      %245 = vmatprep.subr.bf16.mxu0 0
      %246 = vmatpush1.bf16.msra.mxu0 0
      %247 = vmatprep.subr.bf16.mxu0 0
      %248 = vmatpush1.bf16.msra.mxu0 0
      %249 = vmatprep.subr.bf16.mxu0 0
      %250 = vmatpush1.bf16.msra.mxu0 0
      %251 = vmatprep.subr.bf16.mxu0 0
      %252 = vmatpush1.bf16.msra.mxu0 0
      %253 = vmatprep.subr.bf16.mxu0 0
      %254 = vmatpush1.bf16.msra.mxu0 0
      %255 = vmatprep.subr.bf16.mxu0 0
      %256 = vmatpush1.bf16.msra.mxu0 0
      %257 = vmatprep.subr.bf16.mxu0 0
      %258 = vmatpush1.bf16.msra.mxu0 0
      %259 = vmatprep.subr.bf16.mxu0 0
      %260 = vmatpush1.bf16.msra.mxu0 0
      %261 = vmatprep.subr.bf16.mxu0 0
      %262 = vmatpush1.bf16.msra.mxu0 0
      %263 = vmatprep.subr.bf16.mxu0 0
      %264 = vmatpush1.bf16.msra.mxu0 0
      %265 = vmatprep.subr.bf16.mxu0 0
      %266 = vmatpush1.bf16.msra.mxu0 0
      %267 = vmatprep.subr.bf16.mxu0 0
      %268 = vmatpush1.bf16.msra.mxu0 0
      %269 = vmatprep.subr.bf16.mxu0 0
      %270 = vmatpush1.bf16.msra.mxu0 0
      %271 = vmatprep.subr.bf16.mxu0 0
      %272 = vmatpush1.bf16.msra.mxu0 0
      %273 = vmatprep.mubr.bf16.mxu0 0
      %274 = vmatmul.mubr.bf16.gmra.mrb[0].mxu0 %v232
      %v275 = vpop.f32.mrb[0].mxu0
      %v276 = vadd.f32 %v223, %v275
      %v277 = vpop.f32.mrb[0].mxu0
      %v278 = vadd.f32 %v223, %v277
      %v279 = vpop.f32.mrb[0].mxu0
      %v280 = vadd.f32 %v228, %v279
      %v281 = vpop.f32.mrb[0].mxu0
      %v282 = vadd.f32 %v228, %v281
      %283 = vdwg.mxu0
      %284 = vst [vmem:[%s208] sm:$0xff] %v276
      %285 = vst [vmem:[%s208 + $0x8] sm:$0xff] %v278
      %286 = vst [vmem:[%s208 + $0x10] sm:$0xff] %v280
      %287 = vst [vmem:[%s208 + $0x18] sm:$0xff] %v282
      %s288 = smul.u32 2, %s19
      %p289 = scmp.lt.s32.totalorder %s18, 1
      %s290 = scalar_select %p289, %s18, 1
      %p291 = scmp.lt.s32.totalorder %s288, 1
      %s292 = scalar_select %p291, %s288, 1
      %s293 = smul.addr %s290, 4
      %s294 = sadd.s32 %s292, %s293
      %s295 = smul.addr %s294, 8
      %s296 = scalar_lea.vmem %s3, %s295
      // Predicated region
      $region33: #{up_forward.1} parent=31 // pred_check
        %p297 = pneg %p116
      $region34: #{up_forward.1} parent=31 // pred_check_branch
        %299 = sbr.rel (%p297) target = $region36
      $region35: #{up_forward.1} parent=31 // pred_region
        %s300 = smul.u32 2, %s19
      $region36: #{up_forward.1} parent=31 // pred_fallthru
        _
    $region32: #{up_forward.1} parent=5 // pred_fallthru
      _
    %p301 = scmp.le.s32.totalorder 2, %s9
    // Predicated region
    $region37: #{up_forward.1} parent=5 // pred_check
      %p302 = pneg %p301
    $region38: #{up_forward.1} parent=5 // pred_check_branch
      %304 = sbr.rel (%p302) target = $region40
    $region39: #{up_forward.1} parent=5 // pred_region
      %s305 = ssub.s32 %s9, 2
      // Predicated region
      $region41: #{up_forward.1} parent=39 // pred_check
        %p306 = pneg %p122
      $region42: #{up_forward.1} parent=39 // pred_check_branch
        %308 = sbr.rel (%p306) target = $region44
      $region43: #{up_forward.1} parent=39 // pred_region
        %s309 = smul.u32 2, %s21
        %p310 = scmp.lt.s32.totalorder %s20, 1
        %s311 = scalar_select %p310, %s20, 1
        %p312 = scmp.lt.s32.totalorder %s309, 1
        %s313 = scalar_select %p312, %s309, 1
        %s314 = smul.addr %s311, 4
        %s315 = sadd.s32 %s313, %s314
        %s316 = smul.addr %s315, 8
        %s317 = scalar_lea.vmem %s3, %s316
      $region44: #{up_forward.1} parent=39 // pred_fallthru
        _
    $region40: #{up_forward.1} parent=5 // pred_fallthru
      _
  $region6: #{up_forward.1} parent=0 // loop_footer
    %s13 = sadd.s32 1, %s9
  $region7: #{up_forward.1} parent=0 // loop_footer_branch
    %8 = sbr.rel target = $region3
  $region8: #{up_forward.1} parent=0 // loop_exit
    _

</llo_original>
